<compile_context>
chip_gen: v5e
topology: v5e:2x2
jax: 0.10.0
libtpu: 0.0.40
codegen_flags: <defaults>
</compile_context>

<pallas_src>
import functools

import jax
import jax.numpy as jnp
import numpy as np
from jax.experimental import pallas as pl
from jax.experimental.pallas import tpu as pltpu

LANES = 128


def _dace_kernel(pc_ref, pd_ref, td_ref, ce_ref, l1_ref, ce_acc, l1_acc, *,
                 bins, squared):
    # pc_ref: (1, C, TS, 128)   pd_ref/td_ref: (1, TS, 128)
    # ce_ref/l1_ref: (1, 1, 128) outputs   ce_acc/l1_acc: (TS, 128) f32 scratch
    t = pl.program_id(1)
    num_t = pl.num_programs(1)
    C = len(bins)

    @pl.when(t == 0)
    def _():
        ce_acc[...] = jnp.zeros_like(ce_acc)
        l1_acc[...] = jnp.zeros_like(l1_acc)

    td = td_ref[0].astype(jnp.float32)            # (TS, 128)
    pd = pd_ref[0].astype(jnp.float32)            # (TS, 128)

    # Running max over classes (unrolled elementwise loop over leading C axis).
    l0 = pc_ref[0, 0].astype(jnp.float32)
    m = l0
    for c in range(1, C):
        m = jnp.maximum(m, pc_ref[0, c].astype(jnp.float32))

    # Fused exp-sum + bin-assignment/selection.  Default class is 0 (so `sel`
    # starts at logits[0]; bin 0's bounds are irrelevant) and later bins
    # overwrite earlier matches, matching torch's _bin_count semantics.
    esum = jnp.exp(l0 - m)
    sel = l0
    for c in range(1, C):
        lc = pc_ref[0, c].astype(jnp.float32)
        esum = esum + jnp.exp(lc - m)
        lo, hi = bins[c]
        sel = jnp.where((td >= lo) & (td <= hi), lc, sel)

    lse = m + jnp.log(esum)
    ce_acc[...] += lse - sel                      # per-pixel cross entropy

    diff = pd - td
    if squared:                                   # 'mse'
        l1_acc[...] += diff * diff
    else:                                         # 'mae'
        l1_acc[...] += jnp.abs(diff)

    @pl.when(t == num_t - 1)
    def _():
        # One sublane (XLU) reduce per batch element; lane-dense 512 B writes.
        ce_ref[0] = jnp.sum(ce_acc[...], axis=0, keepdims=True)
        l1_ref[0] = jnp.sum(l1_acc[...], axis=0, keepdims=True)


def _reshape_density(target_density, reduction):
    # standard r x r sum-pooling of the high-resolution target density
    B, C, H, W = target_density.shape
    r = reduction
    return target_density.reshape(B, C, H // r, r, W // r, r).sum(axis=(3, 5))


def _pack(x, n_pad, s_pad, fill):
    # x: (..., HW) -> (..., s_pad, 128), padded along HW with `fill`
    if n_pad:
        pad = [(0, 0)] * (x.ndim - 1) + [(0, n_pad)]
        x = jnp.pad(x, pad, constant_values=fill)
    return x.reshape(x.shape[:-1] + (s_pad, LANES))


def dace_loss(pred_class, pred_density, target_density, *, bins, reduction,
              weight_count_loss=1.0, count_loss_type="mae", tile_sublanes=256):
    """DACELoss forward ('mae'/'mse' count loss). Returns (loss, loss_info)."""
    assert count_loss_type in ("mae", "mse")
    # TODO(synk): 'dmcount' (DMLoss / target_points optimal-transport path) not implemented.
    B, C, H, W = pred_class.shape
    assert len(bins) == C

    if target_density.shape[-2:] != pred_density.shape[-2:]:
        # TODO(synk): r x r sum-pooling still runs as an XLA op (not fused into the kernel).
        target_density = _reshape_density(target_density, reduction)
    assert pred_density.shape == target_density.shape

    HW = H * W
    S = pl.cdiv(HW, LANES)                     # sublane rows of flattened frame
    if S <= tile_sublanes:
        TS, T = S, 1                           # single tile per batch element
    else:
        TS, T = tile_sublanes, pl.cdiv(S, tile_sublanes)
    S_pad = TS * T
    n_pad = S_pad * LANES - HW

    # Neutral padding value: exactly zero CE and count-loss contribution.
    FILL = -1e30
    pc = _pack(pred_class.reshape(B, C, HW), n_pad, S_pad, FILL)   # (B,C,S_pad,128)
    pd = _pack(pred_density.reshape(B, HW), n_pad, S_pad, FILL)    # (B,S_pad,128)
    td = _pack(target_density.reshape(B, HW), n_pad, S_pad, FILL)  # (B,S_pad,128)

    kernel = functools.partial(
        _dace_kernel,
        bins=tuple(tuple(b) for b in bins),
        squared=(count_loss_type == "mse"),
    )
    ce_rows, l1_rows = pl.pallas_call(
        kernel,
        grid=(B, T),
        in_specs=[
            pl.BlockSpec((1, C, TS, LANES), lambda b, t: (b, 0, t, 0)),
            pl.BlockSpec((1, TS, LANES), lambda b, t: (b, t, 0)),
            pl.BlockSpec((1, TS, LANES), lambda b, t: (b, t, 0)),
        ],
        out_specs=[
            pl.BlockSpec((1, 1, LANES), lambda b, t: (b, 0, 0)),
            pl.BlockSpec((1, 1, LANES), lambda b, t: (b, 0, 0)),
        ],
        out_shape=[
            jax.ShapeDtypeStruct((B, 1, LANES), jnp.float32),
            jax.ShapeDtypeStruct((B, 1, LANES), jnp.float32),
        ],
        scratch_shapes=[
            pltpu.VMEM((TS, LANES), jnp.float32),
            pltpu.VMEM((TS, LANES), jnp.float32),
        ],
        compiler_params=pltpu.CompilerParams(
            dimension_semantics=("parallel", "arbitrary")),
    )(pc, pd, td)

    cross_entropy_loss = jnp.mean(jnp.sum(ce_rows[:, 0, :], axis=-1))
    count_loss = jnp.mean(jnp.sum(l1_rows[:, 0, :], axis=-1))
    loss = cross_entropy_loss + weight_count_loss * count_loss
    loss_info = {"ce_loss": cross_entropy_loss,
                 f"{count_loss_type}_loss": count_loss, "loss": loss}
    return loss, loss_info


def _reference(pred_class, pred_density, target_density, bins, reduction, w=1.0):
    # pure-JAX reference of the PyTorch forward ('mae' path)
    if target_density.shape[-2:] != pred_density.shape[-2:]:
        target_density = _reshape_density(target_density, reduction)
    cls = jnp.zeros(target_density.shape, dtype=jnp.int32)
    for idx, (lo, hi) in enumerate(bins):
        cls = jnp.where((target_density >= lo) & (target_density <= hi), idx, cls)
    cls = cls[:, 0]                                              # squeeze(1) -> (B,H,W)
    lse = jax.scipy.special.logsumexp(pred_class, axis=1)        # (B,H,W)
    sel = jnp.take_along_axis(pred_class, cls[:, None], axis=1)[:, 0]
    ce = (lse - sel).sum(axis=(-1, -2)).mean()
    l1 = jnp.abs(pred_density - target_density).sum(axis=(-1, -2, -3)).mean()
    return ce + w * l1


def _run_case(key, B, H, W, reduction, bins):
    k1, k2, k3 = jax.random.split(key, 3)
    C = len(bins)
    pred_class = jax.random.normal(k1, (B, C, H, W), dtype=jnp.float32)
    pred_density = jnp.abs(jax.random.normal(k2, (B, 1, H, W), dtype=jnp.float32)) * 0.5
    raw = jax.random.uniform(k3, (B, 1, H * reduction, W * reduction), dtype=jnp.float32)
    target_density = jnp.where(raw < 0.3, 0.0, raw)  # high-res target -> pooling path

    loss, _ = dace_loss(pred_class, pred_density, target_density,
                        bins=bins, reduction=reduction, weight_count_loss=1.0)
    loss = jax.block_until_ready(loss)
    ref = jax.block_until_ready(
        _reference(pred_class, pred_density, target_density, bins, reduction, 1.0))
    np.testing.assert_allclose(np.asarray(loss), np.asarray(ref), rtol=1e-4, atol=1e-4)


if __name__ == "__main__":
    bins = [(0.0, 0.0), (1e-6, 0.5), (0.5 + 1e-6, 1.5), (1.5 + 1e-6, 1e8)]
    key = jax.random.PRNGKey(0)
    ka, kb = jax.random.split(key)

    # target_points only used by DMLoss ('dmcount'); unused for 'mae'/'mse'.
    _run_case(ka, B=2, H=16, W=16, reduction=2, bins=bins)   # HW multiple of 128
    _run_case(kb, B=2, H=12, W=12, reduction=2, bins=bins)   # exercises lane padding

    print("KERNEL_OK")
</pallas_src>

<mosaic_0001>
module attributes {stable_mosaic.version = 11 : i64} {
  func.func @_dace_kernel(%arg0: i32, %arg1: i32, %arg2: memref<1x4x2x128xf32, #tpu.memory_space<vmem>>, %arg3: memref<1x2x128xf32, #tpu.memory_space<vmem>>, %arg4: memref<1x2x128xf32, #tpu.memory_space<vmem>>, %arg5: memref<1x1x128xf32, #tpu.memory_space<vmem>>, %arg6: memref<1x1x128xf32, #tpu.memory_space<vmem>>, %arg7: memref<2x128xf32, #tpu.memory_space<vmem>>, %arg8: memref<2x128xf32, #tpu.memory_space<vmem>>) attributes {dimension_semantics = [#tpu.dimension_semantics<parallel>, #tpu.dimension_semantics<arbitrary>], iteration_bounds = array<i64: 2, 1>, scalar_prefetch = 0 : i64, scratch_operands = 2 : i64, tpu.core_type = #tpu.core_type<tc>, window_params = [{transform_indices = @transform_0, window_bounds = array<i64: 1, 4, 2, 128>}, {transform_indices = @transform_1, window_bounds = array<i64: 1, 2, 128>}, {transform_indices = @transform_2, window_bounds = array<i64: 1, 2, 128>}, {transform_indices = @transform_3, window_bounds = array<i64: 1, 1, 128>}, {transform_indices = @transform_4, window_bounds = array<i64: 1, 1, 128>}]} {
    %c0_i32 = arith.constant 0 : i32
    %0 = arith.cmpi eq, %arg1, %c0_i32 : i32
    %1 = arith.extui %0 : i1 to i32
    %c0_i32_0 = arith.constant 0 : i32
    %2 = arith.cmpi ne, %1, %c0_i32_0 : i32
    scf.if %2 {
      %cst_46 = arith.constant 0.000000e+00 : f32
      %67 = vector.broadcast %cst_46 : f32 to vector<2x128xf32>
      %c0_47 = arith.constant 0 : index
      %c0_48 = arith.constant 0 : index
      %68 = vector.load %arg7[%c0_47, %c0_48] : memref<2x128xf32, #tpu.memory_space<vmem>>, vector<2x128xf32>
      tpu.vector_store %arg7[%c0_47, %c0_48], %67 {strides = array<i32>} : memref<2x128xf32, #tpu.memory_space<vmem>>, vector<2x128xf32>,
      %cst_49 = arith.constant 0.000000e+00 : f32
      %69 = vector.broadcast %cst_49 : f32 to vector<2x128xf32>
      %c0_50 = arith.constant 0 : index
      %c0_51 = arith.constant 0 : index
      %70 = vector.load %arg8[%c0_50, %c0_51] : memref<2x128xf32, #tpu.memory_space<vmem>>, vector<2x128xf32>
      tpu.vector_store %arg8[%c0_50, %c0_51], %69 {strides = array<i32>} : memref<2x128xf32, #tpu.memory_space<vmem>>, vector<2x128xf32>,
    } else {
    }
    %c0 = arith.constant 0 : index
    %c0_1 = arith.constant 0 : index
    %c0_2 = arith.constant 0 : index
    %3 = vector.load %arg4[%c0, %c0_1, %c0_2] : memref<1x2x128xf32, #tpu.memory_space<vmem>>, vector<1x2x128xf32>
    %4 = vector.shape_cast %3 : vector<1x2x128xf32> to vector<2x128xf32>
    %c0_3 = arith.constant 0 : index
    %c0_4 = arith.constant 0 : index
    %c0_5 = arith.constant 0 : index
    %5 = vector.load %arg3[%c0_3, %c0_4, %c0_5] : memref<1x2x128xf32, #tpu.memory_space<vmem>>, vector<1x2x128xf32>
    %6 = vector.shape_cast %5 : vector<1x2x128xf32> to vector<2x128xf32>
    %c0_6 = arith.constant 0 : index
    %c0_7 = arith.constant 0 : index
    %c0_8 = arith.constant 0 : index
    %c0_9 = arith.constant 0 : index
    %7 = vector.load %arg2[%c0_6, %c0_7, %c0_8, %c0_9] : memref<1x4x2x128xf32, #tpu.memory_space<vmem>>, vector<1x1x2x128xf32>
    %8 = vector.shape_cast %7 : vector<1x1x2x128xf32> to vector<2x128xf32>
    %c0_10 = arith.constant 0 : index
    %c1 = arith.constant 1 : index
    %c0_11 = arith.constant 0 : index
    %c0_12 = arith.constant 0 : index
    %9 = vector.load %arg2[%c0_10, %c1, %c0_11, %c0_12] : memref<1x4x2x128xf32, #tpu.memory_space<vmem>>, vector<1x1x2x128xf32>
    %10 = vector.shape_cast %9 : vector<1x1x2x128xf32> to vector<2x128xf32>
    %11 = arith.maximumf %8, %10 : vector<2x128xf32>
    %c0_13 = arith.constant 0 : index
    %c2 = arith.constant 2 : index
    %c0_14 = arith.constant 0 : index
    %c0_15 = arith.constant 0 : index
    %12 = vector.load %arg2[%c0_13, %c2, %c0_14, %c0_15] : memref<1x4x2x128xf32, #tpu.memory_space<vmem>>, vector<1x1x2x128xf32>
    %13 = vector.shape_cast %12 : vector<1x1x2x128xf32> to vector<2x128xf32>
    %14 = arith.maximumf %11, %13 : vector<2x128xf32>
    %c0_16 = arith.constant 0 : index
    %c3 = arith.constant 3 : index
    %c0_17 = arith.constant 0 : index
    %c0_18 = arith.constant 0 : index
    %15 = vector.load %arg2[%c0_16, %c3, %c0_17, %c0_18] : memref<1x4x2x128xf32, #tpu.memory_space<vmem>>, vector<1x1x2x128xf32>
    %16 = vector.shape_cast %15 : vector<1x1x2x128xf32> to vector<2x128xf32>
    %17 = arith.maximumf %14, %16 : vector<2x128xf32>
    %18 = arith.subf %8, %17 : vector<2x128xf32>
    %19 = math.exp %18 : vector<2x128xf32>
    %c0_19 = arith.constant 0 : index
    %c1_20 = arith.constant 1 : index
    %c0_21 = arith.constant 0 : index
    %c0_22 = arith.constant 0 : index
    %20 = vector.load %arg2[%c0_19, %c1_20, %c0_21, %c0_22] : memref<1x4x2x128xf32, #tpu.memory_space<vmem>>, vector<1x1x2x128xf32>
    %21 = vector.shape_cast %20 : vector<1x1x2x128xf32> to vector<2x128xf32>
    %22 = arith.subf %21, %17 : vector<2x128xf32>
    %23 = math.exp %22 : vector<2x128xf32>
    %24 = arith.addf %19, %23 : vector<2x128xf32>
    %cst = arith.constant 9.99999997E-7 : f32
    %25 = vector.broadcast %cst : f32 to vector<2x128xf32>
    %26 = arith.cmpf oge, %4, %25 : vector<2x128xf32>
    %cst_23 = arith.constant 5.000000e-01 : f32
    %27 = vector.broadcast %cst_23 : f32 to vector<2x128xf32>
    %28 = arith.cmpf ole, %4, %27 : vector<2x128xf32>
    %29 = arith.andi %26, %28 : vector<2x128xi1>
    %30 = arith.select %29, %21, %8 : vector<2x128xi1>, vector<2x128xf32>
    %c0_24 = arith.constant 0 : index
    %c2_25 = arith.constant 2 : index
    %c0_26 = arith.constant 0 : index
    %c0_27 = arith.constant 0 : index
    %31 = vector.load %arg2[%c0_24, %c2_25, %c0_26, %c0_27] : memref<1x4x2x128xf32, #tpu.memory_space<vmem>>, vector<1x1x2x128xf32>
    %32 = vector.shape_cast %31 : vector<1x1x2x128xf32> to vector<2x128xf32>
    %33 = arith.subf %32, %17 : vector<2x128xf32>
    %34 = math.exp %33 : vector<2x128xf32>
    %35 = arith.addf %24, %34 : vector<2x128xf32>
    %cst_28 = arith.constant 5.000010e-01 : f32
    %36 = vector.broadcast %cst_28 : f32 to vector<2x128xf32>
    %37 = arith.cmpf oge, %4, %36 : vector<2x128xf32>
    %cst_29 = arith.constant 1.500000e+00 : f32
    %38 = vector.broadcast %cst_29 : f32 to vector<2x128xf32>
    %39 = arith.cmpf ole, %4, %38 : vector<2x128xf32>
    %40 = arith.andi %37, %39 : vector<2x128xi1>
    %41 = arith.select %40, %32, %30 : vector<2x128xi1>, vector<2x128xf32>
    %c0_30 = arith.constant 0 : index
    %c3_31 = arith.constant 3 : index
    %c0_32 = arith.constant 0 : index
    %c0_33 = arith.constant 0 : index
    %42 = vector.load %arg2[%c0_30, %c3_31, %c0_32, %c0_33] : memref<1x4x2x128xf32, #tpu.memory_space<vmem>>, vector<1x1x2x128xf32>
    %43 = vector.shape_cast %42 : vector<1x1x2x128xf32> to vector<2x128xf32>
    %44 = arith.subf %43, %17 : vector<2x128xf32>
    %45 = math.exp %44 : vector<2x128xf32>
    %46 = arith.addf %35, %45 : vector<2x128xf32>
    %cst_34 = arith.constant 1.50000095 : f32
    %47 = vector.broadcast %cst_34 : f32 to vector<2x128xf32>
    %48 = arith.cmpf oge, %4, %47 : vector<2x128xf32>
    %cst_35 = arith.constant 1.000000e+08 : f32
    %49 = vector.broadcast %cst_35 : f32 to vector<2x128xf32>
    %50 = arith.cmpf ole, %4, %49 : vector<2x128xf32>
    %51 = arith.andi %48, %50 : vector<2x128xi1>
    %52 = arith.select %51, %43, %41 : vector<2x128xi1>, vector<2x128xf32>
    %53 = math.log %46 : vector<2x128xf32>
    %54 = arith.addf %17, %53 : vector<2x128xf32>
    %c0_36 = arith.constant 0 : index
    %c0_37 = arith.constant 0 : index
    %55 = vector.load %arg7[%c0_36, %c0_37] : memref<2x128xf32, #tpu.memory_space<vmem>>, vector<2x128xf32>
    %56 = arith.subf %54, %52 : vector<2x128xf32>
    %57 = arith.addf %55, %56 : vector<2x128xf32>
    %c0_38 = arith.constant 0 : index
    %c0_39 = arith.constant 0 : index
    %58 = vector.load %arg7[%c0_38, %c0_39] : memref<2x128xf32, #tpu.memory_space<vmem>>, vector<2x128xf32>
    tpu.vector_store %arg7[%c0_38, %c0_39], %57 {strides = array<i32>} : memref<2x128xf32, #tpu.memory_space<vmem>>, vector<2x128xf32>,
    %59 = arith.subf %6, %4 : vector<2x128xf32>
    %c0_40 = arith.constant 0 : index
    %c0_41 = arith.constant 0 : index
    %60 = vector.load %arg8[%c0_40, %c0_41] : memref<2x128xf32, #tpu.memory_space<vmem>>, vector<2x128xf32>
    %61 = math.absf %59 : vector<2x128xf32>
    %62 = arith.addf %60, %61 : vector<2x128xf32>
    %c0_42 = arith.constant 0 : index
    %c0_43 = arith.constant 0 : index
    %63 = vector.load %arg8[%c0_42, %c0_43] : memref<2x128xf32, #tpu.memory_space<vmem>>, vector<2x128xf32>
    tpu.vector_store %arg8[%c0_42, %c0_43], %62 {strides = array<i32>} : memref<2x128xf32, #tpu.memory_space<vmem>>, vector<2x128xf32>,
    %c0_i32_44 = arith.constant 0 : i32
    %64 = arith.cmpi eq, %arg1, %c0_i32_44 : i32
    %65 = arith.extui %64 : i1 to i32
    %c0_i32_45 = arith.constant 0 : i32
    %66 = arith.cmpi ne, %65, %c0_i32_45 : i32
    scf.if %66 {
      %c0_46 = arith.constant 0 : index
      %c0_47 = arith.constant 0 : index
      %67 = vector.load %arg7[%c0_46, %c0_47] : memref<2x128xf32, #tpu.memory_space<vmem>>, vector<2x128xf32>
      %cst_48 = arith.constant dense<0.000000e+00> : vector<128xf32>
      %68 = vector.multi_reduction <add>, %67, %cst_48 [0] : vector<2x128xf32> to vector<128xf32>
      %69 = vector.shape_cast %68 : vector<128xf32> to vector<1x128xf32>
      %c0_49 = arith.constant 0 : index
      %c0_50 = arith.constant 0 : index
      %c0_51 = arith.constant 0 : index
      %70 = vector.load %arg5[%c0_49, %c0_50, %c0_51] : memref<1x1x128xf32, #tpu.memory_space<vmem>>, vector<1x1x128xf32>
      %71 = vector.shape_cast %70 : vector<1x1x128xf32> to vector<1x128xf32>
      %72 = vector.shape_cast %69 : vector<1x128xf32> to vector<1x1x128xf32>
      tpu.vector_store %arg5[%c0_49, %c0_50, %c0_51], %72 {strides = array<i32>} : memref<1x1x128xf32, #tpu.memory_space<vmem>>, vector<1x1x128xf32>,
      %c0_52 = arith.constant 0 : index
      %c0_53 = arith.constant 0 : index
      %73 = vector.load %arg8[%c0_52, %c0_53] : memref<2x128xf32, #tpu.memory_space<vmem>>, vector<2x128xf32>
      %cst_54 = arith.constant dense<0.000000e+00> : vector<128xf32>
      %74 = vector.multi_reduction <add>, %73, %cst_54 [0] : vector<2x128xf32> to vector<128xf32>
      %75 = vector.shape_cast %74 : vector<128xf32> to vector<1x128xf32>
      %c0_55 = arith.constant 0 : index
      %c0_56 = arith.constant 0 : index
      %c0_57 = arith.constant 0 : index
      %76 = vector.load %arg6[%c0_55, %c0_56, %c0_57] : memref<1x1x128xf32, #tpu.memory_space<vmem>>, vector<1x1x128xf32>
      %77 = vector.shape_cast %76 : vector<1x1x128xf32> to vector<1x128xf32>
      %78 = vector.shape_cast %75 : vector<1x128xf32> to vector<1x1x128xf32>
      tpu.vector_store %arg6[%c0_55, %c0_56, %c0_57], %78 {strides = array<i32>} : memref<1x1x128xf32, #tpu.memory_space<vmem>>, vector<1x1x128xf32>,
    } else {
    }
    return
  }
  func.func @transform_0(%arg0: i32, %arg1: i32) -> (i32, i32, i32, i32) {
    %c0_i32 = arith.constant 0 : i32
    %c0_i32_0 = arith.constant 0 : i32
    %c0_i32_1 = arith.constant 0 : i32
    return %arg0, %c0_i32, %arg1, %c0_i32_0 : i32, i32, i32, i32
  }
  func.func @transform_1(%arg0: i32, %arg1: i32) -> (i32, i32, i32) {
    %c0_i32 = arith.constant 0 : i32
    %c0_i32_0 = arith.constant 0 : i32
    return %arg0, %arg1, %c0_i32 : i32, i32, i32
  }
  func.func @transform_2(%arg0: i32, %arg1: i32) -> (i32, i32, i32) {
    %c0_i32 = arith.constant 0 : i32
    %c0_i32_0 = arith.constant 0 : i32
    return %arg0, %arg1, %c0_i32 : i32, i32, i32
  }
  func.func @transform_3(%arg0: i32, %arg1: i32) -> (i32, i32, i32) {
    %c0_i32 = arith.constant 0 : i32
    %c0_i32_0 = arith.constant 0 : i32
    %c0_i32_1 = arith.constant 0 : i32
    return %arg0, %c0_i32, %c0_i32_0 : i32, i32, i32
  }
  func.func @transform_4(%arg0: i32, %arg1: i32) -> (i32, i32, i32) {
    %c0_i32 = arith.constant 0 : i32
    %c0_i32_0 = arith.constant 0 : i32
    %c0_i32_1 = arith.constant 0 : i32
    return %arg0, %c0_i32, %c0_i32_0 : i32, i32, i32
  }
}

</mosaic_0001>

<llo_original>
// kernel: tpu_custom_call.1
$region0: #{tpu_custom_call.1}
  #allocation0 [shape = 'u32[]', space=smem, size = 0x4, offset = 0x4, fixed_abs, tag = 'smem constant byte address 0x4 - core index']
  #allocation1 [shape = 'u32[72,128]{1,0:T(1,128)}', space=vmem, size = 0x9000, scoped, tag = 'internal scratch']
  #allocation2 [shape = 'f32[2,128]{1,0:T(2,128)}', space=vmem, size = 0x400, scoped, tag = 'scratch operand']
  #allocation3 [shape = 'f32[2,128]{1,0:T(2,128)}', space=vmem, size = 0x400, scoped, tag = 'scratch operand']
  %s0 = inlined_call_operand.hbm [shape: f32[2,4,2,128], index: 0, kind: input, shape index: {}]
  %s1 = inlined_call_operand.hbm [shape: f32[2,2,128], index: 1, kind: input, shape index: {}]
  %s2 = inlined_call_operand.hbm [shape: f32[2,2,128], index: 2, kind: input, shape index: {}]
  %s3 = inlined_call_operand.hbm [shape: f32[2,1,128], index: 3, kind: output, shape index: {0}]
  %s4 = inlined_call_operand.hbm [shape: f32[2,1,128], index: 4, kind: output, shape index: {1}]
  %5 = xla_tuple %s3, %s4
  %s6 = sld [smem:[#allocation0]]
  $region73: #{tpu_custom_call.1} parent=0
    _
  %s8 = ssub.s32 1, %s6
  %s9 = scalar_select 0, %s8, %s6
  $region1: #{tpu_custom_call.1} parent=0
    #allocation4 [shape = 'u8[8192]{0}', space=vmem, size = 0x2000, scoped, tag = 'input window, operand 0']
    #allocation5 [shape = 's32[2]{0}', space=sflag, size = 0x8, scoped, tag = 'scoped memory for tpu_custom_call.1']
    #allocation6 [shape = 's32[2]{0}', space=sflag, size = 0x8, scoped, tag = 'scoped memory for tpu_custom_call.1']
    #allocation7 [shape = 'u8[2048]{0}', space=vmem, size = 0x800, scoped, tag = 'input window, operand 1']
    #allocation8 [shape = 's32[2]{0}', space=sflag, size = 0x8, scoped, tag = 'scoped memory for tpu_custom_call.1']
    #allocation9 [shape = 'u8[2048]{0}', space=vmem, size = 0x800, scoped, tag = 'input window, operand 2']
    #allocation10 [shape = 'u8[1024]{0}', space=vmem, size = 0x400, scoped, tag = 'output window, operand 0']
    #allocation11 [shape = 'u8[1024]{0}', space=vmem, size = 0x400, scoped, tag = 'output window, operand 1']
    #allocation12 [shape = 's32[2]{0}', space=sflag, size = 0x8, scoped, tag = 'scoped memory for tpu_custom_call.1']
    %10 = vsyncpa [#allocation5], 0
    %s11 = scalar_lea.sflag [#allocation5], 1
    %12 = vsyncpa %s11, 0
    %13 = vsyncpa [#allocation8], 0
    %s14 = scalar_lea.sflag [#allocation8], 1
    %15 = vsyncpa %s14, 0
    %16 = vsyncpa [#allocation6], 0
    %s17 = scalar_lea.sflag [#allocation6], 1
    %18 = vsyncpa %s17, 0
    %19 = vsyncpa [#allocation12], 0
    %s20 = scalar_lea.sflag [#allocation12], 1
    %21 = vsyncpa %s20, 0
    loop: start=0, step=1, limit=4
    $region2: #{tpu_custom_call.1} parent=1 // loop_pre_header
      _
    $region3: #{tpu_custom_call.1} parent=1 // loop_header
      %s23 = sphi 0, %s27
      %p24 = scmp.ge.s32.totalorder %s23, 4
      %s30 = sphi 0, %s42
      %s31 = sphi 0, %s38
      %s32 = sphi 0, %s30
      %s33 = sphi 0, %s31
      %s34 = sphi 0, %s32
      %s35 = sphi 0, %s33
      %s47 = sphi 0, %s49
      %s50 = sphi 0, %s47
      %s51 = sphi 0, %s50
      %s67 = sphi 0, %s51
      %s75 = sphi 0, %s77
      %s78 = sphi 0, %s75
      %s79 = sphi 0, %s78
      %s95 = sphi 0, %s79
      %s103 = sphi 0, %s105
      %s106 = sphi 0, %s103
      %s107 = sphi 0, %s106
      %s123 = sphi 0, %s107
      %s129 = sphi 0, %s131
      %s132 = sphi 0, %s129
      %s133 = sphi 0, %s132
      %s149 = sphi 0, %s133
      %s155 = sphi 0, %s157
      %s158 = sphi 0, %s155
      %s159 = sphi 0, %s158
      %s175 = sphi 0, %s159
    $region4: #{tpu_custom_call.1} parent=1 // loop_header_branch
      %26 = sbr.rel (%p24) target = $region8
    $region5: #{tpu_custom_call.1} parent=1 // loop_body
      %s28 = ssub.s32 %s23, 1
      %s29 = ssub.s32 %s23, 2
      %s36 = sadd.s32 1, %s31
      %p37 = scmp.ge.s32.totalorder %s36, 1
      %s38 = scalar_select %p37, 0, %s36
      %s39 = sadd.s32 1, %s30
      %s40 = scalar_select %p37, %s39, %s30
      %p41 = scmp.ge.s32.totalorder %s40, 2
      %s42 = scalar_select %p41, 0, %s40
      %s43 = ssub.s32 %s30, %s42
      %s44 = ssub.s32 %s31, %s38
      %s45 = sor.u32 %s43, %s44
      %p46 = scmp.eq.s32.totalorder %s45, 0
      %s48 = sadd.s32 %s47, 1
      %s49 = scalar_select %p46, %s47, %s48
      %p52 = pneg %p46
      %p53 = scmp.eq.s32.totalorder %s23, 1
      %p54 = por %p52, %p53
      %p55 = scmp.ne.s32.totalorder %s47, %s50
      %p56 = scmp.eq.s32.totalorder %s23, 0
      %p57 = por %p55, %p56
      %p58 = scmp.ne.s32.totalorder %s47, %s50
      %p59 = scmp.eq.s32.totalorder %s28, 1
      %p60 = por %p58, %p59
      %p61 = scmp.ne.s32.totalorder %s50, %s51
      %p62 = scmp.eq.s32.totalorder %s28, 0
      %p63 = por %p61, %p62
      %p64 = scmp.ne.s32.totalorder %s50, %s51
      %p65 = scmp.eq.s32.totalorder %s29, 1
      %p66 = por %p64, %p65
      %p68 = scmp.ne.s32.totalorder %s51, %s67
      %p69 = scmp.eq.s32.totalorder %s29, 0
      %p70 = por %p68, %p69
      %s71 = ssub.s32 %s30, %s42
      %s72 = ssub.s32 %s31, %s38
      %s73 = sor.u32 %s71, %s72
      %p74 = scmp.eq.s32.totalorder %s73, 0
      %s76 = sadd.s32 %s75, 1
      %s77 = scalar_select %p74, %s75, %s76
      %p80 = pneg %p74
      %p81 = scmp.eq.s32.totalorder %s23, 1
      %p82 = por %p80, %p81
      %p83 = scmp.ne.s32.totalorder %s75, %s78
      %p84 = scmp.eq.s32.totalorder %s23, 0
      %p85 = por %p83, %p84
      %p86 = scmp.ne.s32.totalorder %s75, %s78
      %p87 = scmp.eq.s32.totalorder %s28, 1
      %p88 = por %p86, %p87
      %p89 = scmp.ne.s32.totalorder %s78, %s79
      %p90 = scmp.eq.s32.totalorder %s28, 0
      %p91 = por %p89, %p90
      %p92 = scmp.ne.s32.totalorder %s78, %s79
      %p93 = scmp.eq.s32.totalorder %s29, 1
      %p94 = por %p92, %p93
      %p96 = scmp.ne.s32.totalorder %s79, %s95
      %p97 = scmp.eq.s32.totalorder %s29, 0
      %p98 = por %p96, %p97
      %s99 = ssub.s32 %s30, %s42
      %s100 = ssub.s32 %s31, %s38
      %s101 = sor.u32 %s99, %s100
      %p102 = scmp.eq.s32.totalorder %s101, 0
      %s104 = sadd.s32 %s103, 1
      %s105 = scalar_select %p102, %s103, %s104
      %p108 = pneg %p102
      %p109 = scmp.eq.s32.totalorder %s23, 1
      %p110 = por %p108, %p109
      %p111 = scmp.ne.s32.totalorder %s103, %s106
      %p112 = scmp.eq.s32.totalorder %s23, 0
      %p113 = por %p111, %p112
      %p114 = scmp.ne.s32.totalorder %s103, %s106
      %p115 = scmp.eq.s32.totalorder %s28, 1
      %p116 = por %p114, %p115
      %p117 = scmp.ne.s32.totalorder %s106, %s107
      %p118 = scmp.eq.s32.totalorder %s28, 0
      %p119 = por %p117, %p118
      %p120 = scmp.ne.s32.totalorder %s106, %s107
      %p121 = scmp.eq.s32.totalorder %s29, 1
      %p122 = por %p120, %p121
      %p124 = scmp.ne.s32.totalorder %s107, %s123
      %p125 = scmp.eq.s32.totalorder %s29, 0
      %p126 = por %p124, %p125
      %s127 = ssub.s32 %s30, %s42
      %p128 = scmp.eq.s32.totalorder %s127, 0
      %s130 = sadd.s32 %s129, 1
      %s131 = scalar_select %p128, %s129, %s130
      %p134 = pneg %p128
      %p135 = scmp.eq.s32.totalorder %s23, 1
      %p136 = por %p134, %p135
      %p137 = scmp.ne.s32.totalorder %s129, %s132
      %p138 = scmp.eq.s32.totalorder %s23, 0
      %p139 = por %p137, %p138
      %p140 = scmp.ne.s32.totalorder %s129, %s132
      %p141 = scmp.eq.s32.totalorder %s28, 1
      %p142 = por %p140, %p141
      %p143 = scmp.ne.s32.totalorder %s132, %s133
      %p144 = scmp.eq.s32.totalorder %s28, 0
      %p145 = por %p143, %p144
      %p146 = scmp.ne.s32.totalorder %s132, %s133
      %p147 = scmp.eq.s32.totalorder %s29, 1
      %p148 = por %p146, %p147
      %p150 = scmp.ne.s32.totalorder %s133, %s149
      %p151 = scmp.eq.s32.totalorder %s29, 0
      %p152 = por %p150, %p151
      %s153 = ssub.s32 %s30, %s42
      %p154 = scmp.eq.s32.totalorder %s153, 0
      %s156 = sadd.s32 %s155, 1
      %s157 = scalar_select %p154, %s155, %s156
      %p160 = pneg %p154
      %p161 = scmp.eq.s32.totalorder %s23, 1
      %p162 = por %p160, %p161
      %p163 = scmp.ne.s32.totalorder %s155, %s158
      %p164 = scmp.eq.s32.totalorder %s23, 0
      %p165 = por %p163, %p164
      %p166 = scmp.ne.s32.totalorder %s155, %s158
      %p167 = scmp.eq.s32.totalorder %s28, 1
      %p168 = por %p166, %p167
      %p169 = scmp.ne.s32.totalorder %s158, %s159
      %p170 = scmp.eq.s32.totalorder %s28, 0
      %p171 = por %p169, %p170
      %p172 = scmp.ne.s32.totalorder %s158, %s159
      %p173 = scmp.eq.s32.totalorder %s29, 1
      %p174 = por %p172, %p173
      %p176 = scmp.ne.s32.totalorder %s159, %s175
      %p177 = scmp.eq.s32.totalorder %s29, 0
      %p178 = por %p176, %p177
      %p179 = scmp.le.s32.totalorder 1, %s23
      %p180 = scmp.lt.s32.totalorder %s23, 3
      %p181 = pnand %p179, %p180
      %p182 = pneg %p181
      // Predicated region
      $region9: #{tpu_custom_call.1} parent=5 // pred_check
        _
      $region10: #{tpu_custom_call.1} parent=5 // pred_check_branch
        %184 = sbr.rel (%p181) target = $region12
      $region11: #{tpu_custom_call.1} parent=5 // pred_region
        %s185 = ssub.s32 %s23, 1
      $region12: #{tpu_custom_call.1} parent=5 // pred_fallthru
        _
      %p186 = scmp.lt.s32.totalorder %s23, 2
      // Predicated region
      $region13: #{tpu_custom_call.1} parent=5 // pred_check
        %p187 = pneg %p186
      $region14: #{tpu_custom_call.1} parent=5 // pred_check_branch
        %189 = sbr.rel (%p187) target = $region16
      $region15: #{tpu_custom_call.1} parent=5 // pred_region
        // Predicated region
        $region17: #{tpu_custom_call.1} parent=15 // pred_check
          %p190 = pneg %p57
        $region18: #{tpu_custom_call.1} parent=15 // pred_check_branch
          %192 = sbr.rel (%p190) target = $region20
        $region19: #{tpu_custom_call.1} parent=15 // pred_region
          %s193 = sand.u32 %s47, 1
          %s194 = scalar_lea.sflag [#allocation5], %s193
          %s195 = sand.u32 %s47, 1
          %s196 = smul.addr %s195, 8
          %s197 = scalar_lea.vmem [#allocation4], %s196
          %199 = vsyncadd %s194, 0
          %s200 = smul.addr %s30, 4
          %s201 = sadd.s32 %s31, %s200
          %s202 = smul.addr %s201, 2
          %s203 = scalar_lea.hbm %s0, %s202
          %s204 = sshll.u32 %s203, 4
          %s205 = int_to_ptr.hbm [resolvable:$true] %s204
          %s206 = sshll.u32 %s197, 4
          %s207 = int_to_ptr.vmem [resolvable:$true] %s206
          %212 = dma.hbm_to_vmem [thread:$0]  %s205, 128, %s207, %s194, 32, 32, 2
        $region20: #{tpu_custom_call.1} parent=15 // pred_fallthru
          _
        // Predicated region
        $region21: #{tpu_custom_call.1} parent=15 // pred_check
          %p213 = pneg %p85
        $region22: #{tpu_custom_call.1} parent=15 // pred_check_branch
          %215 = sbr.rel (%p213) target = $region24
        $region23: #{tpu_custom_call.1} parent=15 // pred_region
          %s216 = sand.u32 %s23, 1
          %s217 = scalar_lea.sflag [#allocation8], %s216
          %s218 = sand.u32 %s75, 1
          %s219 = smul.addr %s218, 2
          %s220 = scalar_lea.vmem [#allocation7], %s219
          %222 = vsyncadd %s217, 0
          %s223 = sadd.s32 %s31, %s30
          %s224 = smul.addr %s223, 2
          %s225 = scalar_lea.hbm %s1, %s224
          %s227 = sshll.u32 %s225, 4
          %s228 = int_to_ptr.hbm [resolvable:$true] %s227
          %s229 = sshll.u32 %s220, 4
          %s230 = int_to_ptr.vmem [resolvable:$true] %s229
          %232 = dma.hbm_to_vmem [thread:$0]  %s228, 32, %s230, %s217
        $region24: #{tpu_custom_call.1} parent=15 // pred_fallthru
          _
        // Predicated region
        $region25: #{tpu_custom_call.1} parent=15 // pred_check
          %p233 = pneg %p113
        $region26: #{tpu_custom_call.1} parent=15 // pred_check_branch
          %235 = sbr.rel (%p233) target = $region28
        $region27: #{tpu_custom_call.1} parent=15 // pred_region
          %s236 = sand.u32 %s23, 1
          %s237 = scalar_lea.sflag [#allocation8], %s236
          %s238 = sand.u32 %s103, 1
          %s239 = smul.addr %s238, 2
          %s240 = scalar_lea.vmem [#allocation9], %s239
          %242 = vsyncadd %s237, 0
          %s243 = sadd.s32 %s31, %s30
          %s244 = smul.addr %s243, 2
          %s245 = scalar_lea.hbm %s2, %s244
          %s247 = sshll.u32 %s245, 4
          %s248 = int_to_ptr.hbm [resolvable:$true] %s247
          %s249 = sshll.u32 %s240, 4
          %s250 = int_to_ptr.vmem [resolvable:$true] %s249
          %252 = dma.hbm_to_vmem [thread:$0]  %s248, 32, %s250, %s237
        $region28: #{tpu_custom_call.1} parent=15 // pred_fallthru
          _
      $region16: #{tpu_custom_call.1} parent=5 // pred_fallthru
        _
      %p253 = scmp.le.s32.totalorder 1, %s23
      %p254 = scmp.lt.s32.totalorder %s23, 3
      %p255 = pnand %p253, %p254
      %p256 = pneg %p255
      // Predicated region
      $region29: #{tpu_custom_call.1} parent=5 // pred_check
        _
      $region30: #{tpu_custom_call.1} parent=5 // pred_check_branch
        %258 = sbr.rel (%p255) target = $region32
      $region31: #{tpu_custom_call.1} parent=5 // pred_region
        %s259 = ssub.s32 %s23, 1
        %s260 = sand.u32 %s50, 1
        %s261 = scalar_lea.sflag [#allocation5], %s260
        %s262 = sand.u32 %s50, 1
        %s263 = smul.addr %s262, 8
        %s264 = scalar_lea.vmem [#allocation4], %s263
        // Predicated region
        $region33: #{tpu_custom_call.1} parent=31 // pred_check
          %p265 = pneg %p63
        $region34: #{tpu_custom_call.1} parent=31 // pred_check_branch
          %267 = sbr.rel (%p265) target = $region36
        $region35: #{tpu_custom_call.1} parent=31 // pred_region
          %269 = dma.done %s261, 128
        $region36: #{tpu_custom_call.1} parent=31 // pred_fallthru
          _
        %s270 = sand.u32 %s28, 1
        %s271 = scalar_lea.sflag [#allocation8], %s270
        %s272 = sand.u32 %s78, 1
        %s273 = smul.addr %s272, 2
        %s274 = scalar_lea.vmem [#allocation7], %s273
        // Predicated region
        $region37: #{tpu_custom_call.1} parent=31 // pred_check
          %p275 = pneg %p91
        $region38: #{tpu_custom_call.1} parent=31 // pred_check_branch
          %277 = sbr.rel (%p275) target = $region40
        $region39: #{tpu_custom_call.1} parent=31 // pred_region
          %279 = dma.done %s271, 32
        $region40: #{tpu_custom_call.1} parent=31 // pred_fallthru
          _
        %s280 = sand.u32 %s28, 1
        %s281 = scalar_lea.sflag [#allocation8], %s280
        %s282 = sand.u32 %s106, 1
        %s283 = smul.addr %s282, 2
        %s284 = scalar_lea.vmem [#allocation9], %s283
        // Predicated region
        $region41: #{tpu_custom_call.1} parent=31 // pred_check
          %p285 = pneg %p119
        $region42: #{tpu_custom_call.1} parent=31 // pred_check_branch
          %287 = sbr.rel (%p285) target = $region44
        $region43: #{tpu_custom_call.1} parent=31 // pred_region
          %289 = dma.done %s281, 32
        $region44: #{tpu_custom_call.1} parent=31 // pred_fallthru
          _
        %s290 = sand.u32 %s50, 1
        %s291 = scalar_lea.sflag [#allocation5], %s290
        %s292 = sand.u32 %s50, 1
        %s293 = smul.addr %s292, 8
        %s294 = scalar_lea.vmem [#allocation4], %s293
        %p295 = pneg %p63
        %p296 = pneg %p60
        %s297 = sand.u32 %s28, 1
        %s298 = scalar_lea.sflag [#allocation8], %s297
        %s299 = sand.u32 %s78, 1
        %s300 = smul.addr %s299, 2
        %s301 = scalar_lea.vmem [#allocation7], %s300
        %p302 = pneg %p91
        %p303 = pneg %p88
        %s304 = sand.u32 %s28, 1
        %s305 = scalar_lea.sflag [#allocation8], %s304
        %s306 = sand.u32 %s106, 1
        %s307 = smul.addr %s306, 2
        %s308 = scalar_lea.vmem [#allocation9], %s307
        %p309 = pneg %p119
        %p310 = pneg %p116
        %p311 = pneg %p145
        %p312 = pneg %p142
        %s313 = sand.u32 %s132, 1
        %s314 = scalar_lea.sflag [#allocation6], %s313
        %s315 = sand.u32 %s132, 1
        %s316 = scalar_lea.vmem [#allocation10], %s315
        %p317 = pneg %p171
        %p318 = pneg %p168
        %s319 = sand.u32 %s158, 1
        %s320 = scalar_lea.sflag [#allocation12], %s319
        %s321 = sand.u32 %s158, 1
        %s322 = scalar_lea.vmem [#allocation11], %s321
        %p323 = scmp.eq.s32.totalorder %s33, 0
        // Predicated region
        $region45: #{tpu_custom_call.1} parent=31 // pred_check
          %p324 = pneg %p323
        $region46: #{tpu_custom_call.1} parent=31 // pred_check_branch
          %326 = sbr.rel (%p324) target = $region48
        $region47: #{tpu_custom_call.1} parent=31 // pred_region
          %327 = vst [vmem:[#allocation2] sm:$0x3] 0.0
          %328 = vst [vmem:[#allocation3] sm:$0x3] 0.0
        $region48: #{tpu_custom_call.1} parent=31 // pred_fallthru
          _
        %v329 = vld [vmem:[%s284] sm:$0x3]
        %v330 = vld [vmem:[%s274] sm:$0x3]
        %v331 = vld [vmem:[%s264] sm:$0x3]
        %s332 = scalar_lea.vmem %s264, 2 [#allocation4]
        %v333 = vld [vmem:[%s332] sm:$0x3]
        %v334 = vmax.f32 %v331, %v333
        %s335 = scalar_lea.vmem %s264, 4 [#allocation4]
        %v336 = vld [vmem:[%s335] sm:$0x3]
        %v337 = vmax.f32 %v334, %v336
        %s338 = scalar_lea.vmem %s264, 6 [#allocation4]
        %v339 = vld [vmem:[%s338] sm:$0x3]
        %v340 = vmax.f32 %v337, %v339
        %v341 = vsub.f32 %v331, %v340
        %v342 = vmul.f32 %v341, 1.442695
        %v343 = vpow.pop %v342
        %v344 = vsub.f32 %v333, %v340
        %v345 = vmul.f32 %v344, 1.442695
        %v346 = vpow.pop %v345
        %v347 = vadd.f32 %v343, %v346
        %vm348 = vcmp.ge.f32.partialorder %v329, 1e-06
        %vm349 = vcmp.le.f32.partialorder %v329, 0.5
        %vm350 = vmand %vm348, %vm349
        %v351 = vsel %vm350, %v333, %v331
        %v352 = vsub.f32 %v336, %v340
        %v353 = vmul.f32 %v352, 1.442695
        %v354 = vpow.pop %v353
        %v355 = vadd.f32 %v347, %v354
        %vm356 = vcmp.ge.f32.partialorder %v329, 0.500001
        %vm357 = vcmp.le.f32.partialorder %v329, 1.5
        %vm358 = vmand %vm356, %vm357
        %v359 = vsel %vm358, %v336, %v351
        %v360 = vsub.f32 %v339, %v340
        %v361 = vmul.f32 %v360, 1.442695
        %v362 = vpow.pop %v361
        %v363 = vadd.f32 %v355, %v362
        %vm364 = vcmp.ge.f32.partialorder %v329, 1.500001
        %vm365 = vcmp.le.f32.partialorder %v329, 1e+08
        %vm366 = vmand %vm364, %vm365
        %v367 = vsel %vm366, %v339, %v359
        %v368 = vlog2.pop %v363
        %v369 = vmul.f32 %v368, 0.6931472
        %v370 = vadd.f32 %v340, %v369
        %v371 = vld [vmem:[#allocation2] sm:$0x3]
        %v372 = vsub.f32 %v370, %v367
        %v373 = vadd.f32 %v371, %v372
        %374 = vst [vmem:[#allocation2] sm:$0x3] %v373
        %v375 = vsub.f32 %v330, %v329
        %v376 = vld [vmem:[#allocation3] sm:$0x3]
        %v377 = vand.u32 2147483647, %v375
        %v378 = vadd.f32 %v376, %v377
        %379 = vst [vmem:[#allocation3] sm:$0x3] %v378
        // Predicated region
        $region49: #{tpu_custom_call.1} parent=31 // pred_check
          %p380 = pneg %p323
        $region50: #{tpu_custom_call.1} parent=31 // pred_check_branch
          %382 = sbr.rel (%p380) target = $region52
        $region51: #{tpu_custom_call.1} parent=31 // pred_region
          %v383 = vld [vmem:[#allocation2] sm:$0x3]
          %vm384 = vcmask 1041408
          %v385 = vsel %vm384, %v383, 0.0
          %v386 = vrot.slane %v385, 4
          %v387 = vadd.f32 %v385, %v386
          %v388 = vrot.slane %v387, 2
          %v389 = vadd.f32 %v387, %v388
          %v390 = vrot.slane %v389, 1
          %v391 = vadd.f32 %v389, %v390
          %392 = vst [vmem:[%s316] sm:$0x1] %v391
          %v393 = vld [vmem:[#allocation3] sm:$0x3]
          %v394 = vsel %vm384, %v393, 0.0
          %v395 = vrot.slane %v394, 4
          %v396 = vadd.f32 %v394, %v395
          %v397 = vrot.slane %v396, 2
          %v398 = vadd.f32 %v396, %v397
          %v399 = vrot.slane %v398, 1
          %v400 = vadd.f32 %v398, %v399
          %401 = vst [vmem:[%s322] sm:$0x1] %v400
        $region52: #{tpu_custom_call.1} parent=31 // pred_fallthru
          _
        %s402 = sand.u32 %s132, 1
        %s403 = scalar_lea.sflag [#allocation6], %s402
        %s404 = sand.u32 %s132, 1
        %s405 = scalar_lea.vmem [#allocation10], %s404
        %s406 = sand.u32 %s158, 1
        %s407 = scalar_lea.sflag [#allocation12], %s406
        %s408 = sand.u32 %s158, 1
        %s409 = scalar_lea.vmem [#allocation11], %s408
        // Predicated region
        $region53: #{tpu_custom_call.1} parent=31 // pred_check
          %p410 = pneg %p142
        $region54: #{tpu_custom_call.1} parent=31 // pred_check_branch
          %412 = sbr.rel (%p410) target = $region56
        $region55: #{tpu_custom_call.1} parent=31 // pred_region
          %414 = vsyncadd %s403, 0
          %s415 = scalar_lea.hbm %s3, %s32
          %s417 = sshll.u32 %s405, 4
          %s418 = int_to_ptr.vmem [resolvable:$true] %s417
          %s419 = sshll.u32 %s415, 4
          %s420 = int_to_ptr.hbm [resolvable:$true] %s419
          %422 = dma.vmem_to_hbm [thread:$0]  %s418, 16, %s420, %s403
        $region56: #{tpu_custom_call.1} parent=31 // pred_fallthru
          _
        // Predicated region
        $region57: #{tpu_custom_call.1} parent=31 // pred_check
          %p423 = pneg %p168
        $region58: #{tpu_custom_call.1} parent=31 // pred_check_branch
          %425 = sbr.rel (%p423) target = $region60
        $region59: #{tpu_custom_call.1} parent=31 // pred_region
          %427 = vsyncadd %s407, 0
          %s428 = scalar_lea.hbm %s4, %s32
          %s430 = sshll.u32 %s409, 4
          %s431 = int_to_ptr.vmem [resolvable:$true] %s430
          %s432 = sshll.u32 %s428, 4
          %s433 = int_to_ptr.hbm [resolvable:$true] %s432
          %435 = dma.vmem_to_hbm [thread:$0]  %s431, 16, %s433, %s407
        $region60: #{tpu_custom_call.1} parent=31 // pred_fallthru
          _
      $region32: #{tpu_custom_call.1} parent=5 // pred_fallthru
        _
      %p436 = scmp.le.s32.totalorder 2, %s23
      // Predicated region
      $region61: #{tpu_custom_call.1} parent=5 // pred_check
        %p437 = pneg %p436
      $region62: #{tpu_custom_call.1} parent=5 // pred_check_branch
        %439 = sbr.rel (%p437) target = $region64
      $region63: #{tpu_custom_call.1} parent=5 // pred_region
        %s440 = ssub.s32 %s23, 2
        // Predicated region
        $region65: #{tpu_custom_call.1} parent=63 // pred_check
          %p441 = pneg %p148
        $region66: #{tpu_custom_call.1} parent=63 // pred_check_branch
          %443 = sbr.rel (%p441) target = $region68
        $region67: #{tpu_custom_call.1} parent=63 // pred_region
          %s444 = sand.u32 %s133, 1
          %s445 = scalar_lea.sflag [#allocation6], %s444
          %s446 = sand.u32 %s133, 1
          %s447 = scalar_lea.vmem [#allocation10], %s446
          %449 = dma.done %s445, 16
        $region68: #{tpu_custom_call.1} parent=63 // pred_fallthru
          _
        // Predicated region
        $region69: #{tpu_custom_call.1} parent=63 // pred_check
          %p450 = pneg %p174
        $region70: #{tpu_custom_call.1} parent=63 // pred_check_branch
          %452 = sbr.rel (%p450) target = $region72
        $region71: #{tpu_custom_call.1} parent=63 // pred_region
          %s453 = sand.u32 %s159, 1
          %s454 = scalar_lea.sflag [#allocation12], %s453
          %s455 = sand.u32 %s159, 1
          %s456 = scalar_lea.vmem [#allocation11], %s455
          %458 = dma.done %s454, 16
        $region72: #{tpu_custom_call.1} parent=63 // pred_fallthru
          _
      $region64: #{tpu_custom_call.1} parent=5 // pred_fallthru
        _
    $region6: #{tpu_custom_call.1} parent=1 // loop_footer
      %s27 = sadd.s32 1, %s23
    $region7: #{tpu_custom_call.1} parent=1 // loop_footer_branch
      %22 = sbr.rel target = $region3
    $region8: #{tpu_custom_call.1} parent=1 // loop_exit
      _
    %459 = vsyncpa [#allocation5], 1
    %s460 = scalar_lea.sflag [#allocation5], 1
    %461 = vsyncpa %s460, 1
    %462 = vsyncpa [#allocation8], 1
    %s463 = scalar_lea.sflag [#allocation8], 1
    %464 = vsyncpa %s463, 1
    %465 = vsyncpa [#allocation6], 1
    %s466 = scalar_lea.sflag [#allocation6], 1
    %467 = vsyncpa %s466, 1
    %468 = vsyncpa [#allocation12], 1
    %s469 = scalar_lea.sflag [#allocation12], 1
    %470 = vsyncpa %s469, 1

</llo_original>
